<compile_context>
chip_gen: v7x
topology: tpu7x:2x2x1
jax: 0.10.0
libtpu: 0.0.40
codegen_flags: <defaults>
</compile_context>

<pallas_src>
import functools

import jax
import jax.numpy as jnp
from jax.experimental import pallas as pl
from jax.experimental.pallas import tpu as pltpu

_MAX_ROW_BLOCK = 256  # multiple of 8 (f32 sublane)


def _round_up(x, m):
    return ((x + m - 1) // m) * m


def _default_block_bytes():
    """Per-input-block VMEM budget (bytes). Larger on v7x-class chips."""
    try:
        info = pltpu.get_tpu_info()
        vmem = getattr(info, "vmem_capacity_bytes", None)
        if vmem is not None and vmem <= 80 * 1024 * 1024:
            # v7x-class: 64 MiB VMEM / TC but ~3.2 TB/s HBM -> amortize the
            # ~0.35 us/step grid overhead with bigger blocks.
            return 4 * 1024 * 1024
    except Exception:
        pass
    return 2 * 1024 * 1024


def _choose_tiles(B, N, max_block_bytes, itemsize):
    """Pick (TB, TN) respecting the (8,128)/full-dim rule, VMEM budget, and
    preferring >= 2 blocks on some axis so both v7x TensorCores get work."""
    max_elems = max(max_block_bytes // max(itemsize, 1), 8 * 128)

    # Row (sublane) tile: full batch dim if small, else a multiple of 8.
    if B <= 8:
        tb = B
    else:
        tb = min(B, _MAX_ROW_BLOCK)
        if B >= 16:
            # Cap so the row axis has >= 2 blocks (dual-TC sharding on v7x).
            tb = min(tb, _round_up(pl.cdiv(B, 2), 8))
        # tb is now either == B or a multiple of 8.

    # Column (lane) tile: full N if it fits the budget, else a multiple of 128.
    tn_cap = max(128, ((max_elems // max(tb, 1)) // 128) * 128)
    tn = N if N <= tn_cap else tn_cap

    # If the row axis cannot split, try to give the column axis >= 2 blocks.
    if pl.cdiv(B, tb) == 1 and N >= 2 * 128:
        tn = min(tn, _round_up(pl.cdiv(N, 2), 128))

    return tb, tn


def _vmem_limit_bytes(tb, tn, itemsizes):
    # Double-buffered pipeline footprint for all streamed arrays + headroom.
    per_step = tb * tn * sum(itemsizes)
    limit = 2 * per_step + per_step + (8 << 20)
    return int(min(max(limit, 32 << 20), 64 << 20))


def _elementwise_loss(x, t, binary_targets):
    # inputs = clamp(sigmoid(x), 1e-4, 1 - 1e-4); sigmoid/exp run on the EUP slot.
    p = jnp.clip(jax.nn.sigmoid(x), 0.0001, 1.0 - 0.0001)
    if binary_targets:
        # Targets exactly 0/1: 5*pos*(p-t)^2 + neg*p^2 == (1 + 4*t) * (p - t)^2.
        d = p - t
        return (1.0 + 4.0 * t) * (d * d)
    # Exact module semantics for arbitrary targets (0 when t not in {0, 1}).
    d = p - 1.0
    return jnp.where(t == 1.0, 5.0 * (d * d), jnp.where(t == 0.0, p * p, 0.0))


def _mse_mean_kernel(logits_ref, targets_ref, out_ref, *, n_rows, n_cols,
                     tb, tn, mask_rows, mask_cols, binary_targets):
    i = pl.program_id(0)
    j = pl.program_id(1)

    x = logits_ref[...].astype(jnp.float32)
    t = targets_ref[...].astype(jnp.float32)
    loss = _elementwise_loss(x, t, binary_targets)

    if mask_rows or mask_cols:
        # Only tail blocks pay the iota/compare/where masking work.
        conds = []
        if mask_rows:
            conds.append(i == pl.num_programs(0) - 1)
        if mask_cols:
            conds.append(j == pl.num_programs(1) - 1)
        is_tail = conds[0] if len(conds) == 1 else jnp.logical_or(conds[0], conds[1])

        @pl.when(jnp.logical_not(is_tail))
        def _():
            out_ref[0, 0] = jnp.sum(loss)

        @pl.when(is_tail)
        def _():
            valid = None
            if mask_rows:
                row = jax.lax.broadcasted_iota(jnp.int32, (tb, tn), 0) + i * tb
                valid = row < n_rows
            if mask_cols:
                col = jax.lax.broadcasted_iota(jnp.int32, (tb, tn), 1) + j * tn
                cmask = col < n_cols
                valid = cmask if valid is None else jnp.logical_and(valid, cmask)
            out_ref[0, 0] = jnp.sum(jnp.where(valid, loss, 0.0))
    else:
        out_ref[0, 0] = jnp.sum(loss)


def _mse_none_kernel(logits_ref, targets_ref, out_ref, *, binary_targets):
    x = logits_ref[...].astype(jnp.float32)
    t = targets_ref[...].astype(jnp.float32)
    # Ragged tail blocks may compute on stale OOB lanes, but each output
    # element depends only on its own input element and Pallas drops
    # out-of-bounds output writes, so no masking is needed here.
    out_ref[...] = _elementwise_loss(x, t, binary_targets).astype(out_ref.dtype)


def mse_with_logits_loss(logits, targets, reduction="mean", *,
                         binary_targets=False,
                         out_dtype=None,
                         block_shape=None,
                         max_block_bytes=None):
    assert logits.ndim == 2 and logits.shape == targets.shape
    B, N = logits.shape

    in_itemsizes = [jnp.dtype(logits.dtype).itemsize, jnp.dtype(targets.dtype).itemsize]
    widest_in = max(in_itemsizes)
    if max_block_bytes is None:
        max_block_bytes = _default_block_bytes()
    if block_shape is None:
        TB, TN = _choose_tiles(B, N, max_block_bytes, widest_in)
    else:
        TB, TN = block_shape

    grid = (pl.cdiv(B, TB), pl.cdiv(N, TN))
    mask_rows = (B % TB) != 0
    mask_cols = (N % TN) != 0

    in_specs = [
        pl.BlockSpec((TB, TN), lambda i, j: (i, j)),
        pl.BlockSpec((TB, TN), lambda i, j: (i, j)),
    ]
    in_bytes = B * N * sum(in_itemsizes)

    if reduction == "mean":
        kernel = functools.partial(
            _mse_mean_kernel, n_rows=B, n_cols=N, tb=TB, tn=TN,
            mask_rows=mask_rows, mask_cols=mask_cols,
            binary_targets=binary_targets)
        partials = pl.pallas_call(
            kernel,
            out_shape=jax.ShapeDtypeStruct((grid[0], grid[1]), jnp.float32),
            grid_spec=pltpu.PrefetchScalarGridSpec(
                num_scalar_prefetch=0,
                grid=grid,
                in_specs=in_specs,
                out_specs=pl.BlockSpec((1, 1), lambda i, j: (i, j),
                                       memory_space=pltpu.SMEM),
            ),
            compiler_params=pltpu.CompilerParams(
                dimension_semantics=("parallel", "parallel"),
                vmem_limit_bytes=_vmem_limit_bytes(TB, TN, in_itemsizes)),
            cost_estimate=pl.CostEstimate(
                flops=8 * B * N,
                transcendentals=B * N,
                bytes_accessed=in_bytes + 4 * grid[0] * grid[1]),
        )(logits, targets)
        # Tiny epilogue: combine per-block partial sums, divide by batch size
        # (the module divides by B, not numel).
        return jnp.sum(partials) / jnp.float32(B)

    elif reduction == "none":
        if out_dtype is None:
            out_dtype = (logits.dtype if jnp.issubdtype(logits.dtype, jnp.floating)
                         else jnp.float32)
        out_itemsize = jnp.dtype(out_dtype).itemsize
        kernel = functools.partial(_mse_none_kernel, binary_targets=binary_targets)
        out = pl.pallas_call(
            kernel,
            out_shape=jax.ShapeDtypeStruct((B, N), out_dtype),
            grid_spec=pltpu.PrefetchScalarGridSpec(
                num_scalar_prefetch=0,
                grid=grid,
                in_specs=in_specs,
                out_specs=pl.BlockSpec((TB, TN), lambda i, j: (i, j)),
            ),
            compiler_params=pltpu.CompilerParams(
                dimension_semantics=("parallel", "parallel"),
                vmem_limit_bytes=_vmem_limit_bytes(
                    TB, TN, in_itemsizes + [out_itemsize])),
            cost_estimate=pl.CostEstimate(
                flops=8 * B * N,
                transcendentals=B * N,
                bytes_accessed=in_bytes + out_itemsize * B * N),
        )(logits, targets)
        return out

    else:
        raise ValueError(f"unknown reduction {reduction!r}")


def _reference_loss_map(logits, targets):
    # Faithful transcription of the PyTorch module (for cross-checking).
    x = logits.astype(jnp.float32)
    t = targets.astype(jnp.float32)
    inputs = jnp.clip(jax.nn.sigmoid(x), 0.0001, 1.0 - 0.0001)
    pos_id = (t == 1.0).astype(jnp.float32)
    neg_id = (t == 0.0).astype(jnp.float32)
    return 5.0 * pos_id * (inputs - t) ** 2 + 1.0 * neg_id * inputs ** 2


if __name__ == "__main__":
    # Small shapes consistent with the YOLO-style usage:
    # pred_conf[:, :, 0] -> [B, 13*13]
    B, N = 2, 13 * 13
    key = jax.random.PRNGKey(0)
    k_logits, k_targets, k2 = jax.random.split(key, 3)

    logits = jax.random.normal(k_logits, (B, N), dtype=jnp.float32)
    # gt_obj is 0/1 objectness, exactly 0.0 or 1.0
    targets = jax.random.bernoulli(k_targets, p=0.3, shape=(B, N)).astype(jnp.float32)

    ref_none = _reference_loss_map(logits, targets)
    ref_mean = jnp.sum(ref_none) / B

    # Default tiles, exact (where-based) semantics.
    out_mean = mse_with_logits_loss(logits, targets, reduction="mean")
    out_none = mse_with_logits_loss(logits, targets, reduction="none")

    # Binary-targets fast path (identical for 0/1 targets).
    out_mean_bin = mse_with_logits_loss(logits, targets, reduction="mean",
                                        binary_targets=True)
    out_none_bin = mse_with_logits_loss(logits, targets, reduction="none",
                                        binary_targets=True)

    # Forced small tiles: exercises the tail-masked 'mean' path and the
    # dropped-OOB-write 'none' path on ragged blocks.
    out_mean_tail = mse_with_logits_loss(logits, targets, reduction="mean",
                                         block_shape=(2, 128))
    out_none_tail = mse_with_logits_loss(logits, targets, reduction="none",
                                         block_shape=(2, 128))

    # Narrow dtypes + multi-block parallel grid: bf16 logits, bool targets.
    B2 = 16
    logits2 = jax.random.normal(k2, (B2, N), dtype=jnp.bfloat16)
    targets2 = jax.random.bernoulli(k_targets, p=0.3, shape=(B2, N))
    ref_none2 = _reference_loss_map(logits2, targets2)
    ref_mean2 = jnp.sum(ref_none2) / B2
    out_mean2 = mse_with_logits_loss(logits2, targets2, reduction="mean",
                                     binary_targets=True, block_shape=(8, 128))
    out_none2 = mse_with_logits_loss(logits2, targets2, reduction="none",
                                     binary_targets=True, block_shape=(8, 128))

    jax.block_until_ready((out_mean, out_none, out_mean_bin, out_none_bin,
                           out_mean_tail, out_none_tail, out_mean2, out_none2))

    assert jnp.allclose(out_mean, ref_mean, rtol=1e-5, atol=1e-5), (out_mean, ref_mean)
    assert jnp.allclose(out_none, ref_none, rtol=1e-5, atol=1e-6)
    assert jnp.allclose(out_mean_bin, ref_mean, rtol=1e-5, atol=1e-5)
    assert jnp.allclose(out_none_bin, ref_none, rtol=1e-5, atol=1e-6)
    assert jnp.allclose(out_mean_tail, ref_mean, rtol=1e-5, atol=1e-5), (out_mean_tail, ref_mean)
    assert jnp.allclose(out_none_tail, ref_none, rtol=1e-5, atol=1e-6)
    assert jnp.allclose(out_mean2, ref_mean2, rtol=1e-3, atol=1e-3), (out_mean2, ref_mean2)
    assert jnp.allclose(out_none2.astype(jnp.float32), ref_none2, rtol=2e-2, atol=2e-2)

    print("KERNEL_OK")
</pallas_src>

<mosaic_0001>
module attributes {stable_mosaic.version = 11 : i64} {
  func.func @_mse_mean_kernel(%arg0: i32, %arg1: i32, %arg2: memref<2x169xf32, #tpu.memory_space<vmem>>, %arg3: memref<2x169xf32, #tpu.memory_space<vmem>>, %arg4: memref<1x1xf32, #tpu.memory_space<smem>>) attributes {dimension_semantics = [#tpu.dimension_semantics<parallel>, #tpu.dimension_semantics<parallel>], iteration_bounds = array<i64: 1, 1>, scalar_prefetch = 0 : i64, scratch_operands = 0 : i64, tpu.core_type = #tpu.core_type<tc>, window_params = [{transform_indices = @transform_0, window_bounds = array<i64: 2, 169>}, {transform_indices = @transform_1, window_bounds = array<i64: 2, 169>}, {transform_indices = @transform_2, window_bounds = array<i64: 1, 1>}]} {
    %c0 = arith.constant 0 : index
    %c0_0 = arith.constant 0 : index
    %0 = vector.load %arg2[%c0, %c0_0] : memref<2x169xf32, #tpu.memory_space<vmem>>, vector<2x169xf32>
    %c0_1 = arith.constant 0 : index
    %c0_2 = arith.constant 0 : index
    %1 = vector.load %arg3[%c0_1, %c0_2] : memref<2x169xf32, #tpu.memory_space<vmem>>, vector<2x169xf32>
    %2 = arith.negf %0 : vector<2x169xf32>
    %3 = math.exp %2 : vector<2x169xf32>
    %cst = arith.constant 1.000000e+00 : f32
    %4 = vector.broadcast %cst : f32 to vector<2x169xf32>
    %5 = arith.addf %4, %3 : vector<2x169xf32>
    %6 = arith.divf %4, %5 : vector<2x169xf32>
    %cst_3 = arith.constant 9.99999974E-5 : f32
    %cst_4 = arith.constant 0.999899983 : f32
    %7 = vector.broadcast %cst_3 : f32 to vector<2x169xf32>
    %8 = arith.maximumf %7, %6 : vector<2x169xf32>
    %9 = vector.broadcast %cst_4 : f32 to vector<2x169xf32>
    %10 = arith.minimumf %9, %8 : vector<2x169xf32>
    %cst_5 = arith.constant 1.000000e+00 : f32
    %11 = vector.broadcast %cst_5 : f32 to vector<2x169xf32>
    %12 = arith.subf %10, %11 : vector<2x169xf32>
    %cst_6 = arith.constant 1.000000e+00 : f32
    %13 = vector.broadcast %cst_6 : f32 to vector<2x169xf32>
    %14 = arith.cmpf oeq, %1, %13 : vector<2x169xf32>
    %15 = arith.mulf %12, %12 : vector<2x169xf32>
    %cst_7 = arith.constant 5.000000e+00 : f32
    %16 = vector.broadcast %cst_7 : f32 to vector<2x169xf32>
    %17 = arith.mulf %16, %15 : vector<2x169xf32>
    %cst_8 = arith.constant 0.000000e+00 : f32
    %18 = vector.broadcast %cst_8 : f32 to vector<2x169xf32>
    %19 = arith.cmpf oeq, %1, %18 : vector<2x169xf32>
    %20 = arith.mulf %10, %10 : vector<2x169xf32>
    %cst_9 = arith.constant 0.000000e+00 : f32
    %21 = vector.broadcast %cst_9 : f32 to vector<2x169xf32>
    %22 = arith.select %19, %20, %21 : vector<2x169xi1>, vector<2x169xf32>
    %23 = arith.select %14, %17, %22 : vector<2x169xi1>, vector<2x169xf32>
    %24 = vector.shape_cast %23 : vector<2x169xf32> to vector<1x2x169xf32>
    %cst_10 = arith.constant dense<0.000000e+00> : vector<1xf32>
    %25 = vector.multi_reduction <add>, %24, %cst_10 [1, 2] : vector<1x2x169xf32> to vector<1xf32>
    %26 = vector.shape_cast %25 : vector<1xf32> to vector<1x1x1xf32>
    %27 = vector.extract %26[0, 0, 0] : f32 from vector<1x1x1xf32>
    %c0_11 = arith.constant 0 : index
    %c0_12 = arith.constant 0 : index
    %28 = memref.load %arg4[%c0_11, %c0_12] : memref<1x1xf32, #tpu.memory_space<smem>>
    memref.store %27, %arg4[%c0_11, %c0_12] : memref<1x1xf32, #tpu.memory_space<smem>>
    return
  }
  func.func @transform_0(%arg0: i32, %arg1: i32) -> (i32, i32) {
    %c0_i32 = arith.constant 0 : i32
    return %arg0, %arg1 : i32, i32
  }
  func.func @transform_1(%arg0: i32, %arg1: i32) -> (i32, i32) {
    %c0_i32 = arith.constant 0 : i32
    return %arg0, %arg1 : i32, i32
  }
  func.func @transform_2(%arg0: i32, %arg1: i32) -> (i32, i32) {
    %c0_i32 = arith.constant 0 : i32
    return %arg0, %arg1 : i32, i32
  }
}

</mosaic_0001>

<llo_original>
// kernel: tpu_custom_call.1
$region0: #{tpu_custom_call.1}
  #allocation0 [shape = 'u32[]', space=smem, size = 0x4, offset = 0x4, fixed_abs, tag = 'smem constant byte address 0x4 - core index']
  #allocation1 [shape = 'u32[144,128]{1,0:T(1,128)}', space=vmem, size = 0x12000, scoped, tag = 'internal scratch']
  %s0 = inlined_call_operand.hbm [shape: f32[2,169], index: 0, kind: input, shape index: {}]
  %s1 = inlined_call_operand.hbm [shape: f32[2,169], index: 1, kind: input, shape index: {}]
  %s2 = inlined_call_operand.hbm [shape: f32[1,1], index: 2, kind: output, shape index: {}]
  %s3 = sld [smem:[#allocation0]]
  $region26: #{tpu_custom_call.1} parent=0
    _
  %s5 = ssub.s32 1, %s3
  %s6 = scalar_select 0, %s5, %s3
  $region1: #{tpu_custom_call.1} parent=0
    #allocation2 [shape = 'u8[2048]{0}', space=vmem, size = 0x800, scoped, tag = 'input window, operand 0, single buffered']
    #allocation3 [shape = 's32[1]{0}', space=sflag, size = 0x4, scoped, tag = 'scoped memory for tpu_custom_call.1']
    #allocation4 [shape = 's32[1]{0}', space=sflag, size = 0x4, scoped, tag = 'scoped memory for tpu_custom_call.1']
    #allocation5 [shape = 'u8[2048]{0}', space=vmem, size = 0x800, scoped, tag = 'input window, operand 1, single buffered']
    #allocation6 [shape = 's32[1]{0}', space=sflag, size = 0x4, scoped, tag = 'scoped memory for tpu_custom_call.1']
    #allocation7 [shape = 'u8[512]{0}', space=smem, size = 0x200, scoped, tag = 'output window, operand 0, single buffered']
    %7 = vsyncpa [#allocation3], 0
    %8 = vsyncpa [#allocation6], 0
    %9 = vsyncpa [#allocation4], 0
    // Predicated region
    $region2: #{tpu_custom_call.1} parent=1 // pred_check
      _
    $region3: #{tpu_custom_call.1} parent=1 // pred_check_branch
      %11 = sbr.rel (0) target = $region5
    $region4: #{tpu_custom_call.1} parent=1 // pred_region
      %s13 = ssub.s32 64, 64
      %14 = vsyncadd [#allocation3], %s13
      %s16 = sshll.u32 [#allocation2], 4
      %s17 = int_to_ptr.vmem [resolvable:$true] %s16
      %19 = dma.hbm_to_vmem [thread:$0]  %s0, 64, %s17, [#allocation3]
    $region5: #{tpu_custom_call.1} parent=1 // pred_fallthru
      _
    // Predicated region
    $region6: #{tpu_custom_call.1} parent=1 // pred_check
      _
    $region7: #{tpu_custom_call.1} parent=1 // pred_check_branch
      %21 = sbr.rel (0) target = $region9
    $region8: #{tpu_custom_call.1} parent=1 // pred_region
      %s23 = ssub.s32 64, 64
      %24 = vsyncadd [#allocation6], %s23
      %s26 = sshll.u32 [#allocation5], 4
      %s27 = int_to_ptr.vmem [resolvable:$true] %s26
      %29 = dma.hbm_to_vmem [thread:$0]  %s1, 64, %s27, [#allocation6]
    $region9: #{tpu_custom_call.1} parent=1 // pred_fallthru
      _
    // Predicated region
    $region10: #{tpu_custom_call.1} parent=1 // pred_check
      _
    $region11: #{tpu_custom_call.1} parent=1 // pred_check_branch
      %31 = sbr.rel (0) target = $region13
    $region12: #{tpu_custom_call.1} parent=1 // pred_region
      %32 = dma.done [#allocation3], 64
    $region13: #{tpu_custom_call.1} parent=1 // pred_fallthru
      _
    // Predicated region
    $region14: #{tpu_custom_call.1} parent=1 // pred_check
      _
    $region15: #{tpu_custom_call.1} parent=1 // pred_check_branch
      %34 = sbr.rel (0) target = $region17
    $region16: #{tpu_custom_call.1} parent=1 // pred_region
      %35 = dma.done [#allocation6], 64
    $region17: #{tpu_custom_call.1} parent=1 // pred_fallthru
      _
    %v36 = vld [vmem:[#allocation2] sm:$0xf]
    %v37 = vld [vmem:[#allocation5] sm:$0xf]
    %v38 = vxor.u32 %v36, 2147483648
    %v39 = vmul.f32 %v38, 1.442695
    %v40 = vpow.pop %v39
    %v41 = vadd.f32 %v40, 1.0
    %v42 = vrcp.pop %v41
    %v43 = vmul.f32 1.0, %v42
    %v44 = vmax.f32 %v43, 0.0001
    %v45 = vmin.f32 %v44, 0.9999
    %v46 = vsub.f32 %v45, 1.0
    %vm47 = vcmp.eq.f32.partialorder %v37, 1.0
    %v48 = vmul.f32 %v46, %v46
    %v49 = vmul.f32 %v48, 5.0
    %vm50 = vcmp.eq.f32.partialorder %v37, 0.0
    %v51 = vmul.f32 %v45, %v45
    %v52 = vsel %vm50, %v51, 0.0
    %v53 = vsel %vm47, %v49, %v52
    %v56 = vunpack.c.l.s4 1983009808
    %v57 = vunpack.c.0.s8 %v56
    %v58 = vlaneseq
    %v59 = vshrl.u32 %v58, 7
    %v60 = vsub.s32 %v57, %v59
    %v61 = vrot.slane %v53, %v60
    %v62 = vcombine.high %v61, %v61
    %vm65 = vcmask 1041408
    %v66 = vsel %vm65, %v61, 0.0
    %vm67 = vcmask 328704
    %v68 = vsel %vm67, %v62, 0.0
    %v69 = vadd.f32 %v66, %v68
    %70 = vadd.xlane.f32.xlu0 %v69
    %v71 = vpop.xlane.xlu0 %70
    %v72 = vrot.slane %v71, 4
    %v73 = vadd.f32 %v71, %v72
    %v74 = vrot.slane %v73, 2
    %v75 = vadd.f32 %v73, %v74
    %v76 = vrot.slane %v75, 1
    %v77 = vadd.f32 %v75, %v76
    %s78 = vtos %v77
    %s79 = scalar_lea.smem [#allocation7], 0
    %80 = sst [smem:[%s79]] %s78
    // Predicated region
    $region18: #{tpu_custom_call.1} parent=1 // pred_check
      _
    $region19: #{tpu_custom_call.1} parent=1 // pred_check_branch
      %82 = sbr.rel (0) target = $region21
    $region20: #{tpu_custom_call.1} parent=1 // pred_region
      %s84 = ssub.s32 16, 16
      %85 = vsyncadd [#allocation4], %s84
      %88 = dma.smem_to_hbm [#allocation7], 16, %s2, [#allocation4]
    $region21: #{tpu_custom_call.1} parent=1 // pred_fallthru
      _
    // Predicated region
    $region22: #{tpu_custom_call.1} parent=1 // pred_check
      _
    $region23: #{tpu_custom_call.1} parent=1 // pred_check_branch
      %90 = sbr.rel (0) target = $region25
    $region24: #{tpu_custom_call.1} parent=1 // pred_region
      %91 = dma.done [#allocation4], 16
    $region25: #{tpu_custom_call.1} parent=1 // pred_fallthru
      _
    %92 = sfence
    %93 = vsyncpa [#allocation3], 1
    %94 = vsyncpa [#allocation6], 1
    %95 = vsyncpa [#allocation4], 1

</llo_original>
